<compile_context>
chip_gen: v6e
topology: v6e:2x2x1
jax: 0.10.0
libtpu: 0.0.40
codegen_flags: <defaults>
</compile_context>

<pallas_src>
import jax
import jax.numpy as jnp
import numpy as np
from jax.experimental import pallas as pl
from jax.experimental.pallas import tpu as pltpu


# ----------------------------------------------------------------------------
# Kernel 1: fused K|V projection, written in W-major (B, W, H, .) bf16 layout.
# ----------------------------------------------------------------------------
def _kv_proj_kernel(x_ref, wkv_ref, bkv_ref, kt_ref, vt_ref):
    x = x_ref[0]                                    # (Hp, W, C), caller dtype
    Hp, W, C = x.shape
    CKP = kt_ref.shape[3]                           # padded Q/K width (multiple of 128)

    # Cast first (halves the transpose traffic), then go W-major so the stores
    # below are plain contiguous block writes.
    xt = jnp.transpose(x.astype(jnp.bfloat16), (1, 0, 2)).reshape(W * Hp, C)
    kv = jnp.dot(xt, wkv_ref[...],
                 preferred_element_type=jnp.float32) + bkv_ref[...]   # (W*Hp, CKP+C) f32

    # Column slices are aligned at multiples of 128 -> no relayout copies.
    kt_ref[0] = kv[:, :CKP].astype(kt_ref.dtype).reshape(W, Hp, CKP)
    vt_ref[0] = kv[:, CKP:].astype(vt_ref.dtype).reshape(W, Hp, C)


# ----------------------------------------------------------------------------
# Kernel 2: criss-cross attention over an Ht-row query tile.
# ----------------------------------------------------------------------------
def _cc_attn_kernel(x_ref, wq_ref, bq_ref, kt_ref, vt_ref, out_ref):
    x = x_ref[0]                                    # (Ht, W, C), caller dtype
    Ht, W, C = x.shape
    H = kt_ref.shape[2]
    CKP = kt_ref.shape[3]

    h0 = pl.program_id(1) * Ht                      # first global query row of the tile
    if Ht % 8 == 0:
        h0 = pl.multiple_of(h0, Ht)

    # ---- Q projection for this row tile (bf16 MXU, f32 accumulation) ----
    x2 = x.reshape(Ht * W, C).astype(jnp.bfloat16)
    q2 = jnp.dot(x2, wq_ref[...],
                 preferred_element_type=jnp.float32) + bq_ref[...]    # (Ht*W, CKP) f32
    q = q2.astype(jnp.bfloat16).reshape(Ht, W, CKP)                   # (Ht, W, CKP)
    q_t = jnp.transpose(q, (1, 0, 2))                                 # (W, Ht, CKP)

    k_t = kt_ref[0]                                 # (W, H, CKP) bf16 (full image)
    v_t = vt_ref[0]                                 # (W, H, C)   bf16 (gamma pre-folded)

    # Tile rows of K / V in row-major layout for the width branch (tile-sized
    # transposes only; the full-image K/V stay W-major).
    k_w = jnp.transpose(kt_ref[0, :, pl.ds(h0, Ht), :], (1, 0, 2))    # (Ht, W, CKP)
    v_w = jnp.transpose(vt_ref[0, :, pl.ds(h0, Ht), :], (1, 0, 2))    # (Ht, W, C)

    # ---- energies (f32 accumulation on the MXU) ----
    # e_h[w, q, g] = sum_c Q[h0+q, w, c] * K[g, w, c]
    e_h = jnp.einsum('wqc,wgc->wqg', q_t, k_t,
                     preferred_element_type=jnp.float32)              # (W, Ht, H)
    qq = jax.lax.broadcasted_iota(jnp.int32, (1, Ht, H), 1) + h0
    gg = jax.lax.broadcasted_iota(jnp.int32, (1, Ht, H), 2)
    e_h = jnp.where(qq == gg, -jnp.inf, e_h)        # mask h == g (diagonal)

    # e_w[q, w, v] = sum_c Q[h0+q, w, c] * K[h0+q, v, c]
    e_w = jnp.einsum('qwc,qvc->qwv', q, k_w,
                     preferred_element_type=jnp.float32)              # (Ht, W, W)

    # ---- joint softmax over the concatenated (H + W) axis, without concat ----
    m_h = jnp.max(e_h, axis=-1)                     # (W, Ht)
    m_w = jnp.max(e_w, axis=-1)                     # (Ht, W) (finite: includes v == w)
    m = jnp.maximum(m_h.T, m_w)                     # (Ht, W)
    m_t = m.T                                       # (W, Ht)

    p_h = jnp.exp(e_h - m_t[:, :, None])            # (W, Ht, H) f32
    p_w = jnp.exp(e_w - m[:, :, None])              # (Ht, W, W) f32

    denom = jnp.sum(p_h, axis=-1).T + jnp.sum(p_w, axis=-1)           # (Ht, W)
    scale = pl.reciprocal(denom, approx=True)       # EUP; gamma already folded into V

    # ---- attention-weighted aggregation (bf16 MXU, f32 accumulation) ----
    # out_h_t[w, q, c] = sum_g p_h[w, q, g] * V[g, w, c]
    out_h_t = jnp.einsum('wqg,wgc->wqc', p_h.astype(jnp.bfloat16), v_t,
                         preferred_element_type=jnp.float32)          # (W, Ht, C)
    # Cast before the only full-channel transpose of the step (halves the copy);
    # the sum below is accumulated back in f32.
    out_h = jnp.transpose(out_h_t.astype(jnp.bfloat16), (1, 0, 2))    # (Ht, W, C) bf16
    # out_w[q, w, c] = sum_v p_w[q, w, v] * V[h0+q, v, c]
    out_w = jnp.einsum('qwv,qvc->qwc', p_w.astype(jnp.bfloat16), v_w,
                       preferred_element_type=jnp.float32)            # (Ht, W, C) f32

    out = scale[:, :, None] * (out_h.astype(jnp.float32) + out_w) + x.astype(jnp.float32)
    out_ref[0] = out.astype(out_ref.dtype)


# ----------------------------------------------------------------------------
# Helpers & wrappers
# ----------------------------------------------------------------------------
def _pick_h_tile(h, target, need_mult8=False):
    """Largest tile <= target that divides h; prefers multiples of 8."""
    if h <= target:
        return h
    for t in range(min(target, h), 0, -1):
        if h % t == 0 and t % 8 == 0:
            return t
    if not need_mult8:
        for t in range(min(target, h), 0, -1):
            if h % t == 0:
                return t
    return h


def _vmem_limit_bytes():
    """~7/8 of physical VMEM (v7x: ~56 MiB of 64; v5e/v6e: ~112 MiB of 128)."""
    cap = None
    try:
        info = pltpu.get_tpu_info()
        cap = getattr(info, "vmem_capacity_bytes", None)
    except Exception:
        cap = None
    if cap:
        return int(cap * 7 // 8)
    return 56 * 1024 * 1024  # conservative default that fits every generation


def criss_cross_attention_nhwc(x_nhwc, params, *, h_tile=16, h_tile_proj=32):
    """Native NHWC entry point: (B, H, W, C) -> (B, H, W, C), caller dtype.

    Pass a bf16 `x_nhwc` to halve activation HBM traffic; all intermediate K/V
    traffic is already bf16 and accumulation stays in f32 either way.
    """
    wq, bq, wk, bk, wv, bv, gamma = params
    B, H, W, C = x_nhwc.shape
    cqk = wq.shape[1]                                # = C // 8
    CKP = max(128, -(-cqk // 128) * 128)             # pad Q/K lanes to a multiple of 128

    f32 = jnp.float32

    def _pad_cols(w, b, n):
        pad = n - w.shape[1]
        return (jnp.pad(w.astype(f32), ((0, 0), (0, pad))),
                jnp.pad(b.astype(f32), ((0, pad),)))

    wq_p, bq_p = _pad_cols(wq, bq, CKP)
    wk_p, bk_p = _pad_cols(wk, bk, CKP)

    # Fold gamma into V: attention output is linear in V, so gamma*(out_H+out_W)
    # == attention with (gamma*Wv, gamma*bv); removes a full VPU pass + a scalar input.
    g = jnp.asarray(gamma, f32).reshape(())
    wv_g = wv.astype(f32) * g
    bv_g = bv.astype(f32) * g

    w_kv = jnp.concatenate([wk_p, wv_g], axis=1).astype(jnp.bfloat16)    # (C, CKP+C)
    b_kv = jnp.concatenate([bk_p, bv_g]).reshape(1, CKP + C).astype(f32)
    w_q = wq_p.astype(jnp.bfloat16)                                       # (C, CKP)
    b_q = bq_p.reshape(1, CKP).astype(f32)

    Hp = _pick_h_tile(H, h_tile_proj, need_mult8=True)   # output-block tiling rule
    Ht = _pick_h_tile(H, h_tile, need_mult8=False)
    vmem_limit = _vmem_limit_bytes()

    # ---- pass 1: fused K|V projection, W-major bf16 outputs ----
    k_t, v_t = pl.pallas_call(
        _kv_proj_kernel,
        out_shape=(jax.ShapeDtypeStruct((B, W, H, CKP), jnp.bfloat16),
                   jax.ShapeDtypeStruct((B, W, H, C), jnp.bfloat16)),
        grid=(B, H // Hp),
        in_specs=[
            pl.BlockSpec((1, Hp, W, C), lambda b, t: (b, t, 0, 0)),
            pl.BlockSpec((C, CKP + C), lambda b, t: (0, 0)),
            pl.BlockSpec((1, CKP + C), lambda b, t: (0, 0)),
        ],
        out_specs=(
            pl.BlockSpec((1, W, Hp, CKP), lambda b, t: (b, 0, t, 0)),
            pl.BlockSpec((1, W, Hp, C), lambda b, t: (b, 0, t, 0)),
        ),
        compiler_params=pltpu.CompilerParams(
            dimension_semantics=("parallel", "parallel"),
            vmem_limit_bytes=vmem_limit),
    )(x_nhwc, w_kv, b_kv)

    # ---- pass 2: criss-cross attention over query-row tiles ----
    out = pl.pallas_call(
        _cc_attn_kernel,
        out_shape=jax.ShapeDtypeStruct((B, H, W, C), x_nhwc.dtype),
        grid=(B, H // Ht),
        in_specs=[
            pl.BlockSpec((1, Ht, W, C), lambda b, t: (b, t, 0, 0)),     # x tile (Q + residual)
            pl.BlockSpec((C, CKP), lambda b, t: (0, 0)),                # Wq (padded, bf16)
            pl.BlockSpec((1, CKP), lambda b, t: (0, 0)),                # bq (padded, f32)
            pl.BlockSpec((1, W, H, CKP), lambda b, t: (b, 0, 0, 0)),    # K (full image, resident)
            pl.BlockSpec((1, W, H, C), lambda b, t: (b, 0, 0, 0)),      # V (full image, resident)
        ],
        out_specs=pl.BlockSpec((1, Ht, W, C), lambda b, t: (b, t, 0, 0)),
        compiler_params=pltpu.CompilerParams(
            dimension_semantics=("parallel", "parallel"),
            vmem_limit_bytes=vmem_limit),
    )(x_nhwc, w_q, b_q, k_t, v_t)
    return out


def criss_cross_attention(x_nchw, params):
    """PyTorch-layout wrapper: (B, C, H, W) -> (B, C, H, W).

    Prefer criss_cross_attention_nhwc for NHWC callers to skip the two boundary
    transposes (each is a full HBM read+write of the activations).
    """
    x = jnp.transpose(x_nchw, (0, 2, 3, 1))
    out = criss_cross_attention_nhwc(x, params)
    return jnp.transpose(out, (0, 3, 1, 2))


def _reference(x_nchw, params):
    """Pure-JAX f32 reference mirroring the PyTorch forward exactly."""
    wq, bq, wk, bk, wv, bv, gamma = params
    B, C, H, W = x_nchw.shape
    x = jnp.transpose(x_nchw, (0, 2, 3, 1)).astype(jnp.float32)   # NHWC
    q = x @ wq + bq
    k = x @ wk + bk
    v = x @ wv + bv
    e_h = jnp.einsum('bhwc,bgwc->bhwg', q, k)
    eye = jnp.eye(H, dtype=bool)[None, :, None, :]
    e_h = jnp.where(eye, -jnp.inf, e_h)
    e_w = jnp.einsum('bhwc,bhvc->bhwv', q, k)
    att = jax.nn.softmax(jnp.concatenate([e_h, e_w], axis=-1), axis=-1)
    out_h = jnp.einsum('bgwc,bhwg->bhwc', v, att[..., :H])
    out_w = jnp.einsum('bhvc,bhwv->bhwc', v, att[..., H:])
    out = gamma.reshape(()) * (out_h + out_w) + x
    return jnp.transpose(out, (0, 3, 1, 2))


if __name__ == "__main__":
    # in_dim = 32  ->  query/key channels = in_dim // 8 = 4
    B, C, H, W = 2, 32, 8, 8
    C8 = C // 8

    key = jax.random.PRNGKey(0)
    kx, kwq, kbq, kwk, kbk, kwv, kbv = jax.random.split(key, 7)
    x = jax.random.normal(kx, (B, C, H, W), jnp.float32)

    # 1x1 conv weights stored transposed as (C_in, C_out) for the in-kernel
    # matmuls, plus biases and gamma.
    scale = 1.0 / np.sqrt(C)
    wq = jax.random.normal(kwq, (C, C8), jnp.float32) * scale
    bq = jax.random.normal(kbq, (C8,), jnp.float32) * scale
    wk = jax.random.normal(kwk, (C, C8), jnp.float32) * scale
    bk = jax.random.normal(kbk, (C8,), jnp.float32) * scale
    wv = jax.random.normal(kwv, (C, C), jnp.float32) * scale
    bv = jax.random.normal(kbv, (C,), jnp.float32) * scale
    # PyTorch initializes gamma = 0 (output would equal x); use a nonzero
    # deterministic value so the attention path is actually exercised.
    gamma = jnp.array([0.5], jnp.float32)
    params = (wq, bq, wk, bk, wv, bv, gamma)

    out = criss_cross_attention(x, params)
    out = jax.block_until_ready(out)

    ref = _reference(x, params)
    # bf16 MXU operands + approx reciprocal -> compare with bf16-level tolerance.
    np.testing.assert_allclose(np.asarray(out), np.asarray(ref),
                               rtol=5e-2, atol=5e-2)
    print("KERNEL_OK")
</pallas_src>

<mosaic_0001>
module attributes {stable_mosaic.version = 11 : i64} {
  func.func @_kv_proj_kernel(%arg0: i32, %arg1: i32, %arg2: memref<1x8x8x32xf32, #tpu.memory_space<vmem>>, %arg3: memref<32x160xbf16, #tpu.memory_space<vmem>>, %arg4: memref<1x160xf32, #tpu.memory_space<vmem>>, %arg5: memref<1x8x8x128xbf16, #tpu.memory_space<vmem>>, %arg6: memref<1x8x8x32xbf16, #tpu.memory_space<vmem>>) attributes {dimension_semantics = [#tpu.dimension_semantics<parallel>, #tpu.dimension_semantics<parallel>], iteration_bounds = array<i64: 2, 1>, scalar_prefetch = 0 : i64, scratch_operands = 0 : i64, tpu.core_type = #tpu.core_type<tc>, window_params = [{transform_indices = @transform_0, window_bounds = array<i64: 1, 8, 8, 32>}, {pipeline_mode = #tpu.pipeline_mode<synchronous>, transform_indices = @transform_1, window_bounds = array<i64: 32, 160>}, {pipeline_mode = #tpu.pipeline_mode<synchronous>, transform_indices = @transform_2, window_bounds = array<i64: 1, 160>}, {transform_indices = @transform_3, window_bounds = array<i64: 1, 8, 8, 128>}, {transform_indices = @transform_4, window_bounds = array<i64: 1, 8, 8, 32>}]} {
    %c0 = arith.constant 0 : index
    %c0_0 = arith.constant 0 : index
    %c0_1 = arith.constant 0 : index
    %c0_2 = arith.constant 0 : index
    %0 = vector.load %arg2[%c0, %c0_0, %c0_1, %c0_2] : memref<1x8x8x32xf32, #tpu.memory_space<vmem>>, vector<1x8x8x32xf32>
    %1 = vector.shape_cast %0 : vector<1x8x8x32xf32> to vector<8x8x32xf32>
    %2 = arith.truncf %1 : vector<8x8x32xf32> to vector<8x8x32xbf16>
    %3 = tpu.transpose %2, [1, 0, 2] : vector<8x8x32xbf16> -> vector<8x8x32xbf16>
    %4 = vector.shape_cast %3 : vector<8x8x32xbf16> to vector<64x32xbf16>
    %c0_3 = arith.constant 0 : index
    %c0_4 = arith.constant 0 : index
    %5 = vector.load %arg3[%c0_3, %c0_4] : memref<32x160xbf16, #tpu.memory_space<vmem>>, vector<32x160xbf16>
    %cst = arith.constant dense<0.000000e+00> : vector<64x160xf32>
    %6 = tpu.matmul %4, %5, %cst {dimension_numbers = #tpu.dot_dimension_numbers<[1], [0], [0], [1], [0, 0, 1, 1], [], []>} : vector<64x32xbf16>, vector<32x160xbf16>, vector<64x160xf32> -> vector<64x160xf32>
    %c0_5 = arith.constant 0 : index
    %c0_6 = arith.constant 0 : index
    %7 = vector.load %arg4[%c0_5, %c0_6] : memref<1x160xf32, #tpu.memory_space<vmem>>, vector<1x160xf32>
    %8 = vector.broadcast %7 : vector<1x160xf32> to vector<64x160xf32>
    %9 = arith.addf %6, %8 : vector<64x160xf32>
    %10 = vector.extract_strided_slice %9 {offsets = [0, 0], sizes = [64, 128], strides = [1, 1]} : vector<64x160xf32> to vector<64x128xf32>
    %11 = arith.truncf %10 : vector<64x128xf32> to vector<64x128xbf16>
    %12 = vector.shape_cast %11 : vector<64x128xbf16> to vector<8x8x128xbf16>
    %c0_7 = arith.constant 0 : index
    %c0_8 = arith.constant 0 : index
    %c0_9 = arith.constant 0 : index
    %c0_10 = arith.constant 0 : index
    %13 = vector.load %arg5[%c0_7, %c0_8, %c0_9, %c0_10] : memref<1x8x8x128xbf16, #tpu.memory_space<vmem>>, vector<1x8x8x128xbf16>
    %14 = vector.shape_cast %13 : vector<1x8x8x128xbf16> to vector<8x8x128xbf16>
    %15 = vector.shape_cast %12 : vector<8x8x128xbf16> to vector<1x8x8x128xbf16>
    tpu.vector_store %arg5[%c0_7, %c0_8, %c0_9, %c0_10], %15 {strides = array<i32>} : memref<1x8x8x128xbf16, #tpu.memory_space<vmem>>, vector<1x8x8x128xbf16>,
    %16 = vector.extract_strided_slice %9 {offsets = [0, 128], sizes = [64, 32], strides = [1, 1]} : vector<64x160xf32> to vector<64x32xf32>
    %17 = arith.truncf %16 : vector<64x32xf32> to vector<64x32xbf16>
    %18 = vector.shape_cast %17 : vector<64x32xbf16> to vector<8x8x32xbf16>
    %c0_11 = arith.constant 0 : index
    %c0_12 = arith.constant 0 : index
    %c0_13 = arith.constant 0 : index
    %c0_14 = arith.constant 0 : index
    %19 = vector.load %arg6[%c0_11, %c0_12, %c0_13, %c0_14] : memref<1x8x8x32xbf16, #tpu.memory_space<vmem>>, vector<1x8x8x32xbf16>
    %20 = vector.shape_cast %19 : vector<1x8x8x32xbf16> to vector<8x8x32xbf16>
    %21 = vector.shape_cast %18 : vector<8x8x32xbf16> to vector<1x8x8x32xbf16>
    tpu.vector_store %arg6[%c0_11, %c0_12, %c0_13, %c0_14], %21 {strides = array<i32>} : memref<1x8x8x32xbf16, #tpu.memory_space<vmem>>, vector<1x8x8x32xbf16>,
    return
  }
  func.func @transform_0(%arg0: i32, %arg1: i32) -> (i32, i32, i32, i32) {
    %c0_i32 = arith.constant 0 : i32
    %c0_i32_0 = arith.constant 0 : i32
    %c0_i32_1 = arith.constant 0 : i32
    return %arg0, %arg1, %c0_i32, %c0_i32_0 : i32, i32, i32, i32
  }
  func.func @transform_1(%arg0: i32, %arg1: i32) -> (i32, i32) {
    %c0_i32 = arith.constant 0 : i32
    %c0_i32_0 = arith.constant 0 : i32
    %c0_i32_1 = arith.constant 0 : i32
    return %c0_i32, %c0_i32_0 : i32, i32
  }
  func.func @transform_2(%arg0: i32, %arg1: i32) -> (i32, i32) {
    %c0_i32 = arith.constant 0 : i32
    %c0_i32_0 = arith.constant 0 : i32
    %c0_i32_1 = arith.constant 0 : i32
    return %c0_i32, %c0_i32_0 : i32, i32
  }
  func.func @transform_3(%arg0: i32, %arg1: i32) -> (i32, i32, i32, i32) {
    %c0_i32 = arith.constant 0 : i32
    %c0_i32_0 = arith.constant 0 : i32
    %c0_i32_1 = arith.constant 0 : i32
    return %arg0, %c0_i32, %arg1, %c0_i32_0 : i32, i32, i32, i32
  }
  func.func @transform_4(%arg0: i32, %arg1: i32) -> (i32, i32, i32, i32) {
    %c0_i32 = arith.constant 0 : i32
    %c0_i32_0 = arith.constant 0 : i32
    %c0_i32_1 = arith.constant 0 : i32
    return %arg0, %c0_i32, %arg1, %c0_i32_0 : i32, i32, i32, i32
  }
}

</mosaic_0001>

<llo_original>
// kernel: tpu_custom_call.1
$region0: #{tpu_custom_call.1}
  #allocation0 [shape = 'u32[]', space=smem, size = 0x4, offset = 0x4, fixed_abs, tag = 'smem constant byte address 0x4 - core index']
  #allocation1 [shape = 'u32[144,128]{1,0:T(1,128)}', space=vmem, size = 0x12000, scoped, tag = 'internal scratch']
  %s0 = inlined_call_operand.hbm [shape: f32[2,8,8,32], index: 0, kind: input, shape index: {}]
  %s1 = inlined_call_operand.hbm [shape: bf16[32,160], index: 1, kind: input, shape index: {}]
  %s2 = inlined_call_operand.vmem [shape: f32[1,160], index: 2, kind: input, shape index: {}]
  %s3 = inlined_call_operand.hbm [shape: bf16[2,8,8,128], index: 3, kind: output, shape index: {0}]
  %s4 = inlined_call_operand.hbm [shape: bf16[2,8,8,32], index: 4, kind: output, shape index: {1}]
  %5 = xla_tuple %s3, %s4
  %s6 = sld [smem:[#allocation0]]
  $region61: #{tpu_custom_call.1} parent=0
    _
  %s8 = ssub.s32 1, %s6
  %s9 = scalar_select 0, %s8, %s6
  $region1: #{tpu_custom_call.1} parent=0
    #allocation2 [shape = 'u8[65536]{0}', space=vmem, size = 0x10000, scoped, tag = 'input window, operand 0']
    #allocation3 [shape = 's32[2]{0}', space=sflag, size = 0x8, scoped, tag = 'scoped memory for tpu_custom_call.1']
    #allocation4 [shape = 's32[2]{0}', space=sflag, size = 0x8, scoped, tag = 'scoped memory for tpu_custom_call.1']
    #allocation5 [shape = 'u8[16384]{0}', space=vmem, size = 0x4000, scoped, tag = 'input window, operand 1, single buffered']
    #allocation6 [shape = 's32[1]{0}', space=sflag, size = 0x4, scoped, tag = 'scoped memory for tpu_custom_call.1']
    #allocation7 [shape = 'u8[32768]{0}', space=vmem, size = 0x8000, scoped, tag = 'output window, operand 0']
    #allocation8 [shape = 'u8[32768]{0}', space=vmem, size = 0x8000, scoped, tag = 'output window, operand 1']
    #allocation9 [shape = 's32[2]{0}', space=sflag, size = 0x8, scoped, tag = 'scoped memory for tpu_custom_call.1']
    %10 = vsyncpa [#allocation3], 0
    %s11 = scalar_lea.sflag [#allocation3], 1
    %12 = vsyncpa %s11, 0
    %13 = vsyncpa [#allocation6], 0
    %14 = vsyncpa [#allocation4], 0
    %s15 = scalar_lea.sflag [#allocation4], 1
    %16 = vsyncpa %s15, 0
    %17 = vsyncpa [#allocation9], 0
    %s18 = scalar_lea.sflag [#allocation9], 1
    %19 = vsyncpa %s18, 0
    loop: start=0, step=1, limit=4
    $region2: #{tpu_custom_call.1} parent=1 // loop_pre_header
      _
    $region3: #{tpu_custom_call.1} parent=1 // loop_header
      %s21 = sphi 0, %s25
      %p22 = scmp.ge.s32.totalorder %s21, 4
      %s28 = sphi 0, %s40
      %s29 = sphi 0, %s36
      %s30 = sphi 0, %s28
      %s31 = sphi 0, %s29
      %s32 = sphi 0, %s30
      %s33 = sphi 0, %s31
      %s45 = sphi 0, %s47
      %s48 = sphi 0, %s45
      %s49 = sphi 0, %s48
      %s65 = sphi 0, %s49
      %s69 = sphi 0, %s69
      %s71 = sphi 0, %s69
      %s72 = sphi 0, %s71
      %s86 = sphi 0, %s72
      %s90 = sphi 0, %s90
      %s92 = sphi 0, %s90
      %s93 = sphi 0, %s92
      %s107 = sphi 0, %s93
      %s115 = sphi 0, %s117
      %s118 = sphi 0, %s115
      %s119 = sphi 0, %s118
      %s135 = sphi 0, %s119
      %s143 = sphi 0, %s145
      %s146 = sphi 0, %s143
      %s147 = sphi 0, %s146
      %s163 = sphi 0, %s147
    $region4: #{tpu_custom_call.1} parent=1 // loop_header_branch
      %24 = sbr.rel (%p22) target = $region8
    $region5: #{tpu_custom_call.1} parent=1 // loop_body
      %s26 = ssub.s32 %s21, 1
      %s27 = ssub.s32 %s21, 2
      %s34 = sadd.s32 1, %s29
      %p35 = scmp.ge.s32.totalorder %s34, 1
      %s36 = scalar_select %p35, 0, %s34
      %s37 = sadd.s32 1, %s28
      %s38 = scalar_select %p35, %s37, %s28
      %p39 = scmp.ge.s32.totalorder %s38, 2
      %s40 = scalar_select %p39, 0, %s38
      %s41 = ssub.s32 %s28, %s40
      %s42 = ssub.s32 %s29, %s36
      %s43 = sor.u32 %s41, %s42
      %p44 = scmp.eq.s32.totalorder %s43, 0
      %s46 = sadd.s32 %s45, 1
      %s47 = scalar_select %p44, %s45, %s46
      %p50 = pneg %p44
      %p51 = scmp.eq.s32.totalorder %s21, 1
      %p52 = por %p50, %p51
      %p53 = scmp.ne.s32.totalorder %s45, %s48
      %p54 = scmp.eq.s32.totalorder %s21, 0
      %p55 = por %p53, %p54
      %p56 = scmp.ne.s32.totalorder %s45, %s48
      %p57 = scmp.eq.s32.totalorder %s26, 1
      %p58 = por %p56, %p57
      %p59 = scmp.ne.s32.totalorder %s48, %s49
      %p60 = scmp.eq.s32.totalorder %s26, 0
      %p61 = por %p59, %p60
      %p62 = scmp.ne.s32.totalorder %s48, %s49
      %p63 = scmp.eq.s32.totalorder %s27, 1
      %p64 = por %p62, %p63
      %p66 = scmp.ne.s32.totalorder %s49, %s65
      %p67 = scmp.eq.s32.totalorder %s27, 0
      %p68 = por %p66, %p67
      %s70 = sadd.s32 %s69, 1
      %p73 = scmp.eq.s32.totalorder %s21, 1
      %p74 = scmp.ne.s32.totalorder %s69, %s71
      %p75 = scmp.eq.s32.totalorder %s21, 0
      %p76 = por %p74, %p75
      %p77 = scmp.ne.s32.totalorder %s69, %s71
      %p78 = scmp.eq.s32.totalorder %s26, 1
      %p79 = por %p77, %p78
      %p80 = scmp.ne.s32.totalorder %s71, %s72
      %p81 = scmp.eq.s32.totalorder %s26, 0
      %p82 = por %p80, %p81
      %p83 = scmp.ne.s32.totalorder %s71, %s72
      %p84 = scmp.eq.s32.totalorder %s27, 1
      %p85 = por %p83, %p84
      %p87 = scmp.ne.s32.totalorder %s72, %s86
      %p88 = scmp.eq.s32.totalorder %s27, 0
      %p89 = por %p87, %p88
      %s91 = sadd.s32 %s90, 1
      %p94 = scmp.eq.s32.totalorder %s21, 1
      %p95 = scmp.ne.s32.totalorder %s90, %s92
      %p96 = scmp.eq.s32.totalorder %s21, 0
      %p97 = por %p95, %p96
      %p98 = scmp.ne.s32.totalorder %s90, %s92
      %p99 = scmp.eq.s32.totalorder %s26, 1
      %p100 = por %p98, %p99
      %p101 = scmp.ne.s32.totalorder %s92, %s93
      %p102 = scmp.eq.s32.totalorder %s26, 0
      %p103 = por %p101, %p102
      %p104 = scmp.ne.s32.totalorder %s92, %s93
      %p105 = scmp.eq.s32.totalorder %s27, 1
      %p106 = por %p104, %p105
      %p108 = scmp.ne.s32.totalorder %s93, %s107
      %p109 = scmp.eq.s32.totalorder %s27, 0
      %p110 = por %p108, %p109
      %s111 = ssub.s32 %s28, %s40
      %s112 = ssub.s32 %s29, %s36
      %s113 = sor.u32 %s111, %s112
      %p114 = scmp.eq.s32.totalorder %s113, 0
      %s116 = sadd.s32 %s115, 1
      %s117 = scalar_select %p114, %s115, %s116
      %p120 = pneg %p114
      %p121 = scmp.eq.s32.totalorder %s21, 1
      %p122 = por %p120, %p121
      %p123 = scmp.ne.s32.totalorder %s115, %s118
      %p124 = scmp.eq.s32.totalorder %s21, 0
      %p125 = por %p123, %p124
      %p126 = scmp.ne.s32.totalorder %s115, %s118
      %p127 = scmp.eq.s32.totalorder %s26, 1
      %p128 = por %p126, %p127
      %p129 = scmp.ne.s32.totalorder %s118, %s119
      %p130 = scmp.eq.s32.totalorder %s26, 0
      %p131 = por %p129, %p130
      %p132 = scmp.ne.s32.totalorder %s118, %s119
      %p133 = scmp.eq.s32.totalorder %s27, 1
      %p134 = por %p132, %p133
      %p136 = scmp.ne.s32.totalorder %s119, %s135
      %p137 = scmp.eq.s32.totalorder %s27, 0
      %p138 = por %p136, %p137
      %s139 = ssub.s32 %s28, %s40
      %s140 = ssub.s32 %s29, %s36
      %s141 = sor.u32 %s139, %s140
      %p142 = scmp.eq.s32.totalorder %s141, 0
      %s144 = sadd.s32 %s143, 1
      %s145 = scalar_select %p142, %s143, %s144
      %p148 = pneg %p142
      %p149 = scmp.eq.s32.totalorder %s21, 1
      %p150 = por %p148, %p149
      %p151 = scmp.ne.s32.totalorder %s143, %s146
      %p152 = scmp.eq.s32.totalorder %s21, 0
      %p153 = por %p151, %p152
      %p154 = scmp.ne.s32.totalorder %s143, %s146
      %p155 = scmp.eq.s32.totalorder %s26, 1
      %p156 = por %p154, %p155
      %p157 = scmp.ne.s32.totalorder %s146, %s147
      %p158 = scmp.eq.s32.totalorder %s26, 0
      %p159 = por %p157, %p158
      %p160 = scmp.ne.s32.totalorder %s146, %s147
      %p161 = scmp.eq.s32.totalorder %s27, 1
      %p162 = por %p160, %p161
      %p164 = scmp.ne.s32.totalorder %s147, %s163
      %p165 = scmp.eq.s32.totalorder %s27, 0
      %p166 = por %p164, %p165
      %p167 = scmp.le.s32.totalorder 1, %s21
      %p168 = scmp.lt.s32.totalorder %s21, 3
      %p169 = pnand %p167, %p168
      %p170 = pneg %p169
      // Predicated region
      $region9: #{tpu_custom_call.1} parent=5 // pred_check
        _
      $region10: #{tpu_custom_call.1} parent=5 // pred_check_branch
        %172 = sbr.rel (%p169) target = $region12
      $region11: #{tpu_custom_call.1} parent=5 // pred_region
        %s173 = ssub.s32 %s21, 1
        // Predicated region
        $region13: #{tpu_custom_call.1} parent=11 // pred_check
          %p174 = pneg %p82
        $region14: #{tpu_custom_call.1} parent=11 // pred_check_branch
          %176 = sbr.rel (%p174) target = $region16
        $region15: #{tpu_custom_call.1} parent=11 // pred_region
          %s178 = ssub.s32 512, 512
          %179 = vsyncadd [#allocation6], %s178
          %s180 = sshll.u32 [#allocation5], 4
          %s181 = int_to_ptr.vmem [resolvable:$true] %s180
          %186 = dma.hbm_to_vmem [thread:$0]  %s1, 512, %s181, [#allocation6], 128, 128, 8
        $region16: #{tpu_custom_call.1} parent=11 // pred_fallthru
          _
        // Predicated region
        $region17: #{tpu_custom_call.1} parent=11 // pred_check
          %p187 = pneg %p103
        $region18: #{tpu_custom_call.1} parent=11 // pred_check_branch
          %189 = sbr.rel (%p187) target = $region20
        $region19: #{tpu_custom_call.1} parent=11 // pred_region
          _
        $region20: #{tpu_custom_call.1} parent=11 // pred_fallthru
          _
      $region12: #{tpu_custom_call.1} parent=5 // pred_fallthru
        _
      %p190 = scmp.lt.s32.totalorder %s21, 2
      // Predicated region
      $region21: #{tpu_custom_call.1} parent=5 // pred_check
        %p191 = pneg %p190
      $region22: #{tpu_custom_call.1} parent=5 // pred_check_branch
        %193 = sbr.rel (%p191) target = $region24
      $region23: #{tpu_custom_call.1} parent=5 // pred_region
        // Predicated region
        $region25: #{tpu_custom_call.1} parent=23 // pred_check
          %p194 = pneg %p55
        $region26: #{tpu_custom_call.1} parent=23 // pred_check_branch
          %196 = sbr.rel (%p194) target = $region28
        $region27: #{tpu_custom_call.1} parent=23 // pred_region
          %s197 = sand.u32 %s45, 1
          %s198 = scalar_lea.sflag [#allocation3], %s197
          %s199 = sand.u32 %s45, 1
          %s200 = smul.addr %s199, 64
          %s201 = scalar_lea.vmem [#allocation2], %s200
          %s202 = smul.u32 8, %s29
          %s204 = ssub.s32 1024, 1024
          %205 = vsyncadd %s198, %s204
          %s206 = smul.addr %s28, 8
          %s207 = sadd.s32 %s202, %s206
          %s208 = smul.addr %s207, 128
          %s209 = scalar_lea.hbm %s0, %s208
          %s210 = sshll.u32 %s201, 4
          %s211 = int_to_ptr.vmem [resolvable:$true] %s210
          %216 = dma.hbm_to_vmem [thread:$0]  %s209, 1024, %s211, %s198, 128, 128, 8
        $region28: #{tpu_custom_call.1} parent=23 // pred_fallthru
          _
      $region24: #{tpu_custom_call.1} parent=5 // pred_fallthru
        _
      %p217 = scmp.le.s32.totalorder 1, %s21
      %p218 = scmp.lt.s32.totalorder %s21, 3
      %p219 = pnand %p217, %p218
      %p220 = pneg %p219
      // Predicated region
      $region29: #{tpu_custom_call.1} parent=5 // pred_check
        _
      $region30: #{tpu_custom_call.1} parent=5 // pred_check_branch
        %222 = sbr.rel (%p219) target = $region32
      $region31: #{tpu_custom_call.1} parent=5 // pred_region
        %s223 = ssub.s32 %s21, 1
        %s224 = sand.u32 %s48, 1
        %s225 = scalar_lea.sflag [#allocation3], %s224
        %s226 = sand.u32 %s48, 1
        %s227 = smul.addr %s226, 64
        %s228 = scalar_lea.vmem [#allocation2], %s227
        // Predicated region
        $region33: #{tpu_custom_call.1} parent=31 // pred_check
          %p229 = pneg %p61
        $region34: #{tpu_custom_call.1} parent=31 // pred_check_branch
          %231 = sbr.rel (%p229) target = $region36
        $region35: #{tpu_custom_call.1} parent=31 // pred_region
          %232 = dma.done %s225, 1024
        $region36: #{tpu_custom_call.1} parent=31 // pred_fallthru
          _
        // Predicated region
        $region37: #{tpu_custom_call.1} parent=31 // pred_check
          %p233 = pneg %p82
        $region38: #{tpu_custom_call.1} parent=31 // pred_check_branch
          %235 = sbr.rel (%p233) target = $region40
        $region39: #{tpu_custom_call.1} parent=31 // pred_region
          %236 = dma.done [#allocation6], 512
        $region40: #{tpu_custom_call.1} parent=31 // pred_fallthru
          _
        %s237 = sand.u32 %s48, 1
        %s238 = scalar_lea.sflag [#allocation3], %s237
        %s239 = sand.u32 %s48, 1
        %s240 = smul.addr %s239, 64
        %s241 = scalar_lea.vmem [#allocation2], %s240
        %p242 = pneg %p61
        %p243 = pneg %p58
        %p244 = pneg %p82
        %p245 = pneg %p79
        %p246 = pneg %p103
        %p247 = pneg %p100
        %p248 = pneg %p131
        %p249 = pneg %p128
        %s250 = sand.u32 %s118, 1
        %s251 = scalar_lea.sflag [#allocation4], %s250
        %s252 = sand.u32 %s118, 1
        %s253 = smul.addr %s252, 32
        %s254 = scalar_lea.vmem [#allocation7], %s253
        %p255 = pneg %p159
        %p256 = pneg %p156
        %s257 = sand.u32 %s146, 1
        %s258 = scalar_lea.sflag [#allocation9], %s257
        %s259 = sand.u32 %s146, 1
        %s260 = smul.addr %s259, 32
        %s261 = scalar_lea.vmem [#allocation8], %s260
        %s262 = smul.u32 8, %s31
        %v264 = vld [vmem:[%s228] sm:$0xff]
        %v265 = vld [vmem:[%s228 + $0x8] sm:$0xff]
        %v266 = vld [vmem:[%s228 + $0x10] sm:$0xff]
        %v267 = vld [vmem:[%s228 + $0x18] sm:$0xff]
        %v268 = vld [vmem:[%s228 + $0x20] sm:$0xff]
        %v269 = vld [vmem:[%s228 + $0x28] sm:$0xff]
        %v270 = vld [vmem:[%s228 + $0x30] sm:$0xff]
        %v271 = vld [vmem:[%s228 + $0x38] sm:$0xff]
        %v272 = vpack.c.bf16 %v264, %v264
        %v273 = vpack.c.bf16 %v265, %v265
        %v274 = vpack.c.bf16 %v266, %v266
        %v275 = vpack.c.bf16 %v267, %v267
        %v276 = vpack.c.bf16 %v268, %v268
        %v277 = vpack.c.bf16 %v269, %v269
        %v278 = vpack.c.bf16 %v270, %v270
        %v279 = vpack.c.bf16 %v271, %v271
        %v280 = vcombine.low %v272, %v276
        %v282 = vunpack.c.l.s4 1983009808
        %v283 = vunpack.c.0.s8 %v282
        %v284 = vlaneseq
        %v285 = vshrl.u32 %v284, 7
        %v286 = vsub.s32 %v283, %v285
        %v287 = vrot.slane %v280, %v286
        %v288 = vcombine.low %v274, %v278
        %v290 = vunpack.c.l.s4 1983009808
        %v291 = vunpack.c.0.s8 %v290
        %v292 = vlaneseq
        %v293 = vshrl.u32 %v292, 7
        %v294 = vsub.s32 %v291, %v293
        %v295 = vrot.slane %v288, %v294
        %v296 = vcombine.low %v287, %v295
        %v297 = vcombine.high %v287, %v295
        %v299 = vunpack.c.l.s4 1934713408
        %v300 = vunpack.c.0.s8 %v299
        %v301 = vlaneseq
        %v302 = vshrl.u32 %v301, 7
        %v303 = vsub.s32 %v300, %v302
        %v304 = vrot.slane %v296, %v303
        %v306 = vunpack.c.l.s4 1934713408
        %v307 = vunpack.c.0.s8 %v306
        %v308 = vlaneseq
        %v309 = vshrl.u32 %v308, 7
        %v310 = vsub.s32 %v307, %v309
        %v311 = vrot.slane %v297, %v310
        %v312 = vcombine.high %v304, 0
        %v313 = vcombine.high %v311, 0
        %v314 = vcombine.low %v273, %v277
        %v316 = vunpack.c.l.s4 1983009808
        %v317 = vunpack.c.0.s8 %v316
        %v318 = vlaneseq
        %v319 = vshrl.u32 %v318, 7
        %v320 = vsub.s32 %v317, %v319
        %v321 = vrot.slane %v314, %v320
        %v322 = vcombine.low %v275, %v279
        %v324 = vunpack.c.l.s4 1983009808
        %v325 = vunpack.c.0.s8 %v324
        %v326 = vlaneseq
        %v327 = vshrl.u32 %v326, 7
        %v328 = vsub.s32 %v325, %v327
        %v329 = vrot.slane %v322, %v328
        %v330 = vcombine.low %v321, %v329
        %v331 = vcombine.high %v321, %v329
        %v333 = vunpack.c.l.s4 1934713408
        %v334 = vunpack.c.0.s8 %v333
        %v335 = vlaneseq
        %v336 = vshrl.u32 %v335, 7
        %v337 = vsub.s32 %v334, %v336
        %v338 = vrot.slane %v330, %v337
        %v340 = vunpack.c.l.s4 1934713408
        %v341 = vunpack.c.0.s8 %v340
        %v342 = vlaneseq
        %v343 = vshrl.u32 %v342, 7
        %v344 = vsub.s32 %v341, %v343
        %v345 = vrot.slane %v331, %v344
        %v346 = vcombine.high %v338, 0
        %v347 = vcombine.high %v345, 0
        %v350 = vpack.i.b16 %v338, %v304
        %v351 = vshrl.u32 %v304, 16
        %v352 = vshrl.u32 %v338, 16
        %v353 = vpack.i.b16 %v352, %v351
        %v356 = vpack.i.b16 %v346, %v312
        %v357 = vshrl.u32 %v312, 16
        %v358 = vshrl.u32 %v346, 16
        %v359 = vpack.i.b16 %v358, %v357
        %v362 = vpack.i.b16 %v345, %v311
        %v363 = vshrl.u32 %v311, 16
        %v364 = vshrl.u32 %v345, 16
        %v365 = vpack.i.b16 %v364, %v363
        %v368 = vpack.i.b16 %v347, %v313
        %v369 = vshrl.u32 %v313, 16
        %v370 = vshrl.u32 %v347, 16
        %v371 = vpack.i.b16 %v370, %v369
        %v372 = vld [vmem:[#allocation5] sm:$0xff]
        %v373 = vld [vmem:[#allocation5 + $0x8] sm:$0xff]
        %v374 = vld [vmem:[#allocation5 + $0x10] sm:$0xff]
        %v375 = vld [vmem:[#allocation5 + $0x18] sm:$0xff]
        %v376 = vld [vmem:[%s2] sm:$0x3]
        %v378 = vlaneseq
        %v379 = vshrl.u32 %v378, 7
        %v380 = vsub.s32 0, %v379
        %v381 = vrot.slane %v376, %v380
        %v382 = vlaneseq
        %v383 = vshrl.u32 %v382, 7
        %v384 = vsub.s32 1, %v383
        %v385 = vrot.slane %v376, %v384
        %v388 = vunpack.c.l.b16 %v350
        %v389 = vunpack.c.l.b16 %v353
        %v390 = vunpack.c.l.b16 %v356
        %v391 = vunpack.c.l.b16 %v359
        %v392 = vunpack.c.l.b16 %v362
        %v393 = vunpack.c.l.b16 %v365
        %v394 = vunpack.c.l.b16 %v368
        %v395 = vunpack.c.l.b16 %v371
        %v396 = vpack.c.b16 %v389, %v388
        %v397 = vpack.c.b16 %v391, %v390
        %v398 = vpack.c.b16 %v393, %v392
        %v399 = vpack.c.b16 %v395, %v394
        %v404 = vunpack.c.l.b16 %v372
        %v405 = vunpack.c.h.b16 %v372
        %v406 = vunpack.c.l.b16 %v373
        %v407 = vunpack.c.h.b16 %v373
        %v408 = vunpack.c.l.b16 %v374
        %v409 = vunpack.c.h.b16 %v374
        %v410 = vunpack.c.l.b16 %v375
        %v411 = vunpack.c.h.b16 %v375
        %v412 = vpack.c.b16 %v406, %v404
        %v413 = vpack.c.b16 %v407, %v405
        %v414 = vpack.c.b16 %v410, %v408
        %v415 = vpack.c.b16 %v411, %v409
        %vm420 = vcmask 261120
        %v422 = vsel %vm420, %v396, 0
        %v425 = vsel %vm420, %v397, 0
        %v428 = vsel %vm420, %v398, 0
        %v431 = vsel %vm420, %v399, 0
        %433 = vmatprep.subr.bf16.mxu0 0
        %434 = vmatpush1.bf16.msra.mxu0 0
        %435 = vmatprep.subr.bf16.mxu0 0
        %436 = vmatpush1.bf16.msra.mxu0 0
        %437 = vmatprep.subr.bf16.mxu0 0
        %438 = vmatpush1.bf16.msra.mxu0 0
        %439 = vmatprep.subr.bf16.mxu0 0
        %440 = vmatpush1.bf16.msra.mxu0 0
        %441 = vmatprep.subr.bf16.mxu0 0
        %442 = vmatpush1.bf16.msra.mxu0 0
        %443 = vmatprep.subr.bf16.mxu0 0
        %444 = vmatpush1.bf16.msra.mxu0 0
        %445 = vmatprep.subr.bf16.mxu0 %v415
        %446 = vmatpush1.bf16.msra.mxu0 %v414
        %447 = vmatprep.subr.bf16.mxu0 %v413
        %448 = vmatpush1.bf16.msra.mxu0 %v412
        %449 = vmatprep.subr.bf16.mxu0 0
        %450 = vmatpush2.bf16.msra.mxu0 0
        %451 = vmatprep.subr.bf16.mxu0 0
        %452 = vmatpush2.bf16.msra.mxu0 0
        %453 = vmatprep.subr.bf16.mxu0 0
        %454 = vmatpush2.bf16.msra.mxu0 0
        %455 = vmatprep.subr.bf16.mxu0 0
        %456 = vmatpush2.bf16.msra.mxu0 0
        %457 = vmatprep.subr.bf16.mxu0 0
        %458 = vmatpush2.bf16.msra.mxu0 0
        %459 = vmatprep.subr.bf16.mxu0 0
        %460 = vmatpush2.bf16.msra.mxu0 0
        %461 = vmatprep.subr.bf16.mxu0 0
        %462 = vmatpush2.bf16.msra.mxu0 0
        %463 = vmatprep.subr.bf16.mxu0 0
        %464 = vmatpush2.bf16.msra.mxu0 0
        %465 = vmatprep.mubr.bf16.mxu0 0
        %466 = vmatmul.mubr.bf16.gmra.mxu0 %v422
        %v467 = vpop.f32.mrf.mxu0
        %v468 = vadd.f32 %v381, %v467
        %v469 = vpop.f32.mrf.mxu0
        %v470 = vadd.f32 %v385, %v469
        %v471 = vpop.f32.mrf.mxu0
        %v472 = vadd.f32 %v381, %v471
        %v473 = vpop.f32.mrf.mxu0
        %v474 = vadd.f32 %v385, %v473
        %475 = vmatprep.mubr.bf16.mxu0 0
        %476 = vmatmul.mubr.bf16.gmra.mxu0 %v425
        %v477 = vpop.f32.mrf.mxu0
        %v478 = vadd.f32 %v381, %v477
        %v479 = vpop.f32.mrf.mxu0
        %v480 = vadd.f32 %v385, %v479
        %v481 = vpop.f32.mrf.mxu0
        %v482 = vadd.f32 %v381, %v481
        %v483 = vpop.f32.mrf.mxu0
        %v484 = vadd.f32 %v385, %v483
        %485 = vmatprep.mubr.bf16.mxu0 0
        %486 = vmatmul.mubr.bf16.gmra.mxu0 %v428
        %v487 = vpop.f32.mrf.mxu0
        %v488 = vadd.f32 %v381, %v487
        %v489 = vpop.f32.mrf.mxu0
        %v490 = vadd.f32 %v385, %v489
        %v491 = vpop.f32.mrf.mxu0
        %v492 = vadd.f32 %v381, %v491
        %v493 = vpop.f32.mrf.mxu0
        %v494 = vadd.f32 %v385, %v493
        %495 = vmatprep.mubr.bf16.mxu0 0
        %496 = vmatmul.mubr.bf16.gmra.mxu0 %v431
        %v497 = vpop.f32.mrf.mxu0
        %v498 = vadd.f32 %v381, %v497
        %v499 = vpop.f32.mrf.mxu0
        %v500 = vadd.f32 %v385, %v499
        %v501 = vpop.f32.mrf.mxu0
        %v502 = vadd.f32 %v381, %v501
        %v503 = vpop.f32.mrf.mxu0
        %v504 = vadd.f32 %v385, %v503
        %505 = vdwg.mxu0
        %v506 = vpack.c.bf16 %v472, %v468
        %v507 = vpack.c.bf16 %v482, %v478
        %v508 = vpack.c.bf16 %v492, %v488
        %v509 = vpack.c.bf16 %v502, %v498
        %v514 = vunpack.c.l.b16 %v506
        %v515 = vunpack.c.h.b16 %v506
        %v516 = vunpack.c.l.b16 %v507
        %v517 = vunpack.c.h.b16 %v507
        %v518 = vunpack.c.l.b16 %v508
        %v519 = vunpack.c.h.b16 %v508
        %v520 = vunpack.c.l.b16 %v509
        %v521 = vunpack.c.h.b16 %v509
        %v522 = vpack.c.b16 %v514, %v514
        %v523 = vpack.c.b16 %v515, %v515
        %v524 = vpack.c.b16 %v516, %v516
        %v525 = vpack.c.b16 %v517, %v517
        %v526 = vpack.c.b16 %v518, %v518
        %v527 = vpack.c.b16 %v519, %v519
        %v528 = vpack.c.b16 %v520, %v520
        %v529 = vpack.c.b16 %v521, %v521
        %538 = vst [vmem:[%s254] sm:$0xf] %v522
        %539 = vst [vmem:[%s254 + $0x4] sm:$0xf] %v523
        %540 = vst [vmem:[%s254 + $0x8] sm:$0xf] %v524
        %541 = vst [vmem:[%s254 + $0xc] sm:$0xf] %v525
        %542 = vst [vmem:[%s254 + $0x10] sm:$0xf] %v526
        %543 = vst [vmem:[%s254 + $0x14] sm:$0xf] %v527
        %544 = vst [vmem:[%s254 + $0x18] sm:$0xf] %v528
        %545 = vst [vmem:[%s254 + $0x1c] sm:$0xf] %v529
        %v546 = vpack.c.bf16 %v474, %v470
        %v547 = vpack.c.bf16 %v484, %v480
        %v548 = vpack.c.bf16 %v494, %v490
        %v549 = vpack.c.bf16 %v504, %v500
        %v554 = vunpack.c.l.b16 %v546
        %v555 = vunpack.c.h.b16 %v546
        %v556 = vunpack.c.l.b16 %v547
        %v557 = vunpack.c.h.b16 %v547
        %v558 = vunpack.c.l.b16 %v548
        %v559 = vunpack.c.h.b16 %v548
        %v560 = vunpack.c.l.b16 %v549
        %v561 = vunpack.c.h.b16 %v549
        %v562 = vpack.c.b16 %v554, %v554
        %v563 = vpack.c.b16 %v555, %v555
        %v564 = vpack.c.b16 %v556, %v556
        %v565 = vpack.c.b16 %v557, %v557
        %v566 = vpack.c.b16 %v558, %v558
        %v567 = vpack.c.b16 %v559, %v559
        %v568 = vpack.c.b16 %v560, %v560
        %v569 = vpack.c.b16 %v561, %v561
        %vm578 = vcmask 257024
        %579 = vst.msk [vmem:[%s261] sm:$0xf] %vm578, %v562
        %580 = vst.msk [vmem:[%s261 + $0x4] sm:$0xf] %vm578, %v563
        %581 = vst.msk [vmem:[%s261 + $0x8] sm:$0xf] %vm578, %v564
        %582 = vst.msk [vmem:[%s261 + $0xc] sm:$0xf] %vm578, %v565
        %583 = vst.msk [vmem:[%s261 + $0x10] sm:$0xf] %vm578, %v566
        %584 = vst.msk [vmem:[%s261 + $0x14] sm:$0xf] %vm578, %v567
        %585 = vst.msk [vmem:[%s261 + $0x18] sm:$0xf] %vm578, %v568
        %586 = vst.msk [vmem:[%s261 + $0x1c] sm:$0xf] %vm578, %v569
        %s587 = sand.u32 %s118, 1
        %s588 = scalar_lea.sflag [#allocation4], %s587
        %s589 = sand.u32 %s118, 1
        %s590 = smul.addr %s589, 32
        %s591 = scalar_lea.vmem [#allocation7], %s590
        %s592 = sand.u32 %s146, 1
        %s593 = scalar_lea.sflag [#allocation9], %s592
        %s594 = sand.u32 %s146, 1
        %s595 = smul.addr %s594, 32
        %s596 = scalar_lea.vmem [#allocation8], %s595
        // Predicated region
        $region41: #{tpu_custom_call.1} parent=31 // pred_check
          %p597 = pneg %p128
        $region42: #{tpu_custom_call.1} parent=31 // pred_check_branch
          %599 = sbr.rel (%p597) target = $region44
        $region43: #{tpu_custom_call.1} parent=31 // pred_region
          %s601 = ssub.s32 512, 512
          %602 = vsyncadd %s588, %s601
          %s603 = smul.addr %s30, 8
          %s604 = sadd.s32 %s31, %s603
          %s605 = smul.addr %s604, 64
          %s606 = scalar_lea.hbm %s3, %s605
          %s607 = sshll.u32 %s591, 4
          %s608 = int_to_ptr.vmem [resolvable:$true] %s607
          %613 = dma.vmem_to_hbm [thread:$0]  %s608, 512, %s606, %s588, 64, 64, 4
        $region44: #{tpu_custom_call.1} parent=31 // pred_fallthru
          _
        // Predicated region
        $region45: #{tpu_custom_call.1} parent=31 // pred_check
          %p614 = pneg %p156
        $region46: #{tpu_custom_call.1} parent=31 // pred_check_branch
          %616 = sbr.rel (%p614) target = $region48
        $region47: #{tpu_custom_call.1} parent=31 // pred_region
          %s618 = ssub.s32 512, 512
          %619 = vsyncadd %s593, %s618
          %s620 = smul.addr %s30, 8
          %s621 = sadd.s32 %s31, %s620
          %s622 = smul.addr %s621, 64
          %s623 = scalar_lea.hbm %s4, %s622
          %s624 = sshll.u32 %s596, 4
          %s625 = int_to_ptr.vmem [resolvable:$true] %s624
          %630 = dma.vmem_to_hbm [thread:$0]  %s625, 512, %s623, %s593, 64, 64, 4
        $region48: #{tpu_custom_call.1} parent=31 // pred_fallthru
          _
      $region32: #{tpu_custom_call.1} parent=5 // pred_fallthru
        _
      %p631 = scmp.le.s32.totalorder 2, %s21
      // Predicated region
      $region49: #{tpu_custom_call.1} parent=5 // pred_check
        %p632 = pneg %p631
      $region50: #{tpu_custom_call.1} parent=5 // pred_check_branch
        %634 = sbr.rel (%p632) target = $region52
      $region51: #{tpu_custom_call.1} parent=5 // pred_region
        %s635 = ssub.s32 %s21, 2
        // Predicated region
        $region53: #{tpu_custom_call.1} parent=51 // pred_check
          %p636 = pneg %p134
        $region54: #{tpu_custom_call.1} parent=51 // pred_check_branch
          %638 = sbr.rel (%p636) target = $region56
        $region55: #{tpu_custom_call.1} parent=51 // pred_region
          %s639 = sand.u32 %s119, 1
          %s640 = scalar_lea.sflag [#allocation4], %s639
          %s641 = sand.u32 %s119, 1
          %s642 = smul.addr %s641, 32
          %s643 = scalar_lea.vmem [#allocation7], %s642
          %644 = dma.done %s640, 512
        $region56: #{tpu_custom_call.1} parent=51 // pred_fallthru
          _
        // Predicated region
        $region57: #{tpu_custom_call.1} parent=51 // pred_check
          %p645 = pneg %p162
        $region58: #{tpu_custom_call.1} parent=51 // pred_check_branch
          %647 = sbr.rel (%p645) target = $region60
        $region59: #{tpu_custom_call.1} parent=51 // pred_region
          %s648 = sand.u32 %s147, 1
          %s649 = scalar_lea.sflag [#allocation9], %s648
          %s650 = sand.u32 %s147, 1
          %s651 = smul.addr %s650, 32
          %s652 = scalar_lea.vmem [#allocation8], %s651
          %653 = dma.done %s649, 512
        $region60: #{tpu_custom_call.1} parent=51 // pred_fallthru
          _
      $region52: #{tpu_custom_call.1} parent=5 // pred_fallthru
        _
    $region6: #{tpu_custom_call.1} parent=1 // loop_footer
      %s25 = sadd.s32 1, %s21
    $region7: #{tpu_custom_call.1} parent=1 // loop_footer_branch
      %20 = sbr.rel target = $region3
    $region8: #{tpu_custom_call.1} parent=1 // loop_exit
      _
    %654 = vsyncpa [#allocation3], 1
    %s655 = scalar_lea.sflag [#allocation3], 1
    %656 = vsyncpa %s655, 1
    %657 = vsyncpa [#allocation6], 1
    %658 = vsyncpa [#allocation4], 1
    %s659 = scalar_lea.sflag [#allocation4], 1
    %660 = vsyncpa %s659, 1
    %661 = vsyncpa [#allocation9], 1
    %s662 = scalar_lea.sflag [#allocation9], 1
    %663 = vsyncpa %s662, 1

</llo_original>
